<compile_context>
chip_gen: v7x
topology: tpu7x:2x2x1
jax: 0.10.0
libtpu: 0.0.40
codegen_flags: <defaults>
</compile_context>

<pallas_src>
import functools

import jax
import jax.numpy as jnp
import numpy as np
from jax.experimental import pallas as pl
from jax.experimental.pallas import tpu as pltpu

_F32_NEG_SENTINEL = float(np.finfo(np.float32).min)   # max(sentinel, t) == t exactly


def _round_up(x, m):
    return ((x + m - 1) // m) * m


def _pinball_max_kernel(preds_ref, target_ref, out_ref, *, num_q, tj, tk, num_k):
    """Accumulates sum_i max(p_{k,i}, t_j) over all k, lane-folded to 128 columns.

    preds_ref : (num_k, Q, TK) f32, whole (sentinel-padded) preds, resident in VMEM
    target_ref: (TJ, 1)        f32, this grid step's target-row tile
    out_ref   : (TJ, 128)      f32, lane-folded partial sums (summed in the wrapper)
    """
    n_groups = tk // 128

    # Hoist the (TJ,1)->(TJ,128) lane-broadcast of t out of all loops (no CSE in JAX).
    t_b = jnp.broadcast_to(target_ref[...], (tj, 128))

    def chunk(kc):
        # One k-chunk's (TJ, 128) lane-folded contribution: sum over lane groups and
        # quantiles of max(p, t).  2 VALU ops (max, add) per (TJ,128) vreg-group.
        folded = None
        for g in range(n_groups):                       # static, <=4
            s_g = None
            for i in range(num_q):                      # static, tiny
                p_row = preds_ref[kc, pl.ds(i, 1), pl.ds(g * 128, 128)]   # (1, 128)
                m = jnp.maximum(p_row, t_b)                                # (TJ, 128)
                s_g = m if s_g is None else s_g + m
            folded = s_g if folded is None else folded + s_g
        return folded

    # Fold the accumulator init into the first chunk (saves a full zero store pass).
    out_ref[...] = chunk(0)

    if num_k > 1:
        def body(kc, carry):
            out_ref[...] += chunk(kc)
            return carry
        jax.lax.fori_loop(1, num_k, body, 0, unroll=min(4, num_k - 1))


def quantile_loss(preds, target, quantiles):
    """Pallas-backed equivalent of QuantileLoss(quantiles)(preds, target)."""
    if preds.shape[0] != target.shape[0]:
        raise ValueError(
            f"Batch size mismatch between predictions and targets. "
            f"Got preds: {preds.shape[0]}, target: {target.shape[0]}"
        )
    quantiles = tuple(float(q) for q in quantiles)
    B = preds.shape[0]
    Q = len(quantiles)

    preds_f = preds.astype(jnp.float32)[:, :Q]                   # (B, Q)
    target_f = target.astype(jnp.float32).reshape(B, 1)          # (B, 1)

    # k (pred entries) on lanes, j (target rows) on sublanes.
    TK = min(_round_up(B, 128), 512)
    BKp = _round_up(B, TK)
    num_k = BKp // TK

    if B > 128:
        TJ = 128
    else:
        # Aim for >=2 j-programs (megacore) whenever B > 8.
        TJ = max(8, _round_up((B + 1) // 2, 8))
    BJp = _round_up(B, TJ)
    num_j = BJp // TJ

    # Sentinel padding on the pred axis: max(sentinel, t) == t, corrected exactly in
    # the wrapper, so the kernel hot path has no masks at all.
    preds_p = jnp.pad(preds_f, ((0, BKp - B), (0, 0)),
                      constant_values=_F32_NEG_SENTINEL)         # (BKp, Q)
    preds_kt = preds_p.reshape(num_k, TK, Q).transpose(0, 2, 1)  # (num_k, Q, TK)
    target_p = jnp.pad(target_f, ((0, BJp - B), (0, 0)))         # (BJp, 1), pad value irrelevant

    # VMEM budget: resident preds block (+double buffer) + in/out tiles + slack.
    preds_block_bytes = _round_up(Q, 8) * BKp * 4
    est_vmem = 2 * preds_block_bytes + 6 * TJ * 128 * 4 + (4 << 20)
    vmem_limit = int(min(max(est_vmem, 32 << 20), 64 << 20))

    kernel = functools.partial(_pinball_max_kernel, num_q=Q, tj=TJ, tk=TK, num_k=num_k)

    partials = pl.pallas_call(
        kernel,
        out_shape=jax.ShapeDtypeStruct((BJp, 128), jnp.float32),
        grid_spec=pltpu.PrefetchScalarGridSpec(
            num_scalar_prefetch=0,
            grid=(num_j,),
            in_specs=[
                pl.BlockSpec((num_k, Q, TK), lambda j: (0, 0, 0)),  # whole preds, resident
                pl.BlockSpec((TJ, 1), lambda j: (j, 0)),            # per-step target tile
            ],
            out_specs=pl.BlockSpec((TJ, 128), lambda j: (j, 0)),    # lane-dense 128-wide
        ),
        compiler_params=pltpu.CompilerParams(
            dimension_semantics=("parallel",),                      # megacore split
            vmem_limit_bytes=vmem_limit),
    )(preds_kt, target_p)

    # Separable / correction terms (O(B*Q), outside the B^2 loop):
    #   sum_{j,k<B,i} [q_i(t_j - p_ki) - t_j]  +  (- padded-lane max correction)
    #   = (B*sum_q - Q*BKp) * sum_t - B * sum_{k,i} q_i p_ki
    q_vec = jnp.asarray(quantiles, dtype=jnp.float32)
    sum_q = float(sum(quantiles))
    sum_t = jnp.sum(target_f)
    sum_qp = jnp.sum(preds_f * q_vec[None, :])

    kernel_sum = jnp.sum(partials[:B, :])
    total = kernel_sum + (float(B) * sum_q - float(Q * BKp)) * sum_t - float(B) * sum_qp
    return total / float(B * B)


def _torch_reference(preds, target, quantiles):
    """NumPy replica of the exact PyTorch forward (including its broadcasting), in f64."""
    p = np.asarray(preds, dtype=np.float64)
    t = np.asarray(target, dtype=np.float64)
    losses = []
    for i, q in enumerate(quantiles):
        errors = t - p[:, i]                                   # (B,1)-(B,) -> (B,B)
        loss_q = np.maximum((q - 1.0) * errors, q * errors)    # (B,B)
        losses.append(loss_q[:, None, :])                      # (B,1,B)
    loss = np.mean(np.sum(np.concatenate(losses, axis=1), axis=1))
    return np.float64(loss)


if __name__ == "__main__":
    quantiles = [0.1, 0.5, 0.9]

    # 1) Small-shape check matching the module's documented layout.
    batch = 8
    kp, kt = jax.random.split(jax.random.PRNGKey(0))
    preds = jax.random.uniform(kp, (batch, len(quantiles)), dtype=jnp.float32)
    target = jax.random.uniform(kt, (batch, 1), dtype=jnp.float32)
    loss = jax.block_until_ready(quantile_loss(preds, target, quantiles))
    ref = _torch_reference(np.asarray(preds), np.asarray(target), quantiles)
    assert np.allclose(np.asarray(loss), ref, rtol=1e-5, atol=1e-5), (float(loss), float(ref))

    # 2) Odd batch: exercises target-row padding (row slicing) and pred-lane sentinels.
    batch2 = 37
    kp2, kt2 = jax.random.split(jax.random.PRNGKey(1))
    preds2 = jax.random.normal(kp2, (batch2, len(quantiles)), dtype=jnp.float32)
    target2 = jax.random.normal(kt2, (batch2, 1), dtype=jnp.float32)
    loss2 = jax.block_until_ready(quantile_loss(preds2, target2, quantiles))
    ref2 = _torch_reference(np.asarray(preds2), np.asarray(target2), quantiles)
    assert np.allclose(np.asarray(loss2), ref2, rtol=1e-5, atol=1e-5), (float(loss2), float(ref2))

    # 3) Larger batch: exercises the multi-chunk fori_loop path (num_k > 1, num_j > 1).
    batch3 = 640
    kp3, kt3 = jax.random.split(jax.random.PRNGKey(2))
    preds3 = jax.random.normal(kp3, (batch3, len(quantiles)), dtype=jnp.float32)
    target3 = jax.random.normal(kt3, (batch3, 1), dtype=jnp.float32)
    loss3 = jax.block_until_ready(quantile_loss(preds3, target3, quantiles))
    ref3 = _torch_reference(np.asarray(preds3), np.asarray(target3), quantiles)
    assert np.allclose(np.asarray(loss3), ref3, rtol=1e-4, atol=1e-4), (float(loss3), float(ref3))

    print("KERNEL_OK")
</pallas_src>

<mosaic_0001>
module attributes {stable_mosaic.version = 11 : i64} {
  func.func @_pinball_max_kernel(%arg0: i32, %arg1: memref<1x3x128xf32, #tpu.memory_space<vmem>>, %arg2: memref<8x1xf32, #tpu.memory_space<vmem>>, %arg3: memref<8x128xf32, #tpu.memory_space<vmem>>) attributes {dimension_semantics = [#tpu.dimension_semantics<parallel>], iteration_bounds = array<i64: 1>, scalar_prefetch = 0 : i64, scratch_operands = 0 : i64, tpu.core_type = #tpu.core_type<tc>, window_params = [{pipeline_mode = #tpu.pipeline_mode<synchronous>, transform_indices = @transform_0, window_bounds = array<i64: 1, 3, 128>}, {transform_indices = @transform_1, window_bounds = array<i64: 8, 1>}, {transform_indices = @transform_2, window_bounds = array<i64: 8, 128>}]} {
    %c0 = arith.constant 0 : index
    %c0_0 = arith.constant 0 : index
    %0 = vector.load %arg2[%c0, %c0_0] : memref<8x1xf32, #tpu.memory_space<vmem>>, vector<8x1xf32>
    %1 = vector.shape_cast %0 : vector<8x1xf32> to vector<8x1xf32>
    %2 = vector.broadcast %1 : vector<8x1xf32> to vector<8x128xf32>
    %c0_1 = arith.constant 0 : index
    %c0_2 = arith.constant 0 : index
    %c0_3 = arith.constant 0 : index
    %3 = vector.load %arg1[%c0_1, %c0_2, %c0_3] : memref<1x3x128xf32, #tpu.memory_space<vmem>>, vector<1x1x128xf32>
    %4 = vector.shape_cast %3 : vector<1x1x128xf32> to vector<1x128xf32>
    %5 = vector.broadcast %4 : vector<1x128xf32> to vector<8x128xf32>
    %6 = arith.maximumf %5, %2 : vector<8x128xf32>
    %c0_4 = arith.constant 0 : index
    %c1 = arith.constant 1 : index
    %c0_5 = arith.constant 0 : index
    %7 = vector.load %arg1[%c0_4, %c1, %c0_5] : memref<1x3x128xf32, #tpu.memory_space<vmem>>, vector<1x1x128xf32>
    %8 = vector.shape_cast %7 : vector<1x1x128xf32> to vector<1x128xf32>
    %9 = vector.broadcast %8 : vector<1x128xf32> to vector<8x128xf32>
    %10 = arith.maximumf %9, %2 : vector<8x128xf32>
    %11 = arith.addf %6, %10 : vector<8x128xf32>
    %c0_6 = arith.constant 0 : index
    %c2 = arith.constant 2 : index
    %c0_7 = arith.constant 0 : index
    %12 = vector.load %arg1[%c0_6, %c2, %c0_7] : memref<1x3x128xf32, #tpu.memory_space<vmem>>, vector<1x1x128xf32>
    %13 = vector.shape_cast %12 : vector<1x1x128xf32> to vector<1x128xf32>
    %14 = vector.broadcast %13 : vector<1x128xf32> to vector<8x128xf32>
    %15 = arith.maximumf %14, %2 : vector<8x128xf32>
    %16 = arith.addf %11, %15 : vector<8x128xf32>
    %c0_8 = arith.constant 0 : index
    %c0_9 = arith.constant 0 : index
    %17 = vector.load %arg3[%c0_8, %c0_9] : memref<8x128xf32, #tpu.memory_space<vmem>>, vector<8x128xf32>
    tpu.vector_store %arg3[%c0_8, %c0_9], %16 {strides = array<i32>} : memref<8x128xf32, #tpu.memory_space<vmem>>, vector<8x128xf32>,
    return
  }
  func.func @transform_0(%arg0: i32) -> (i32, i32, i32) {
    %c0_i32 = arith.constant 0 : i32
    %c0_i32_0 = arith.constant 0 : i32
    %c0_i32_1 = arith.constant 0 : i32
    %c0_i32_2 = arith.constant 0 : i32
    return %c0_i32, %c0_i32_0, %c0_i32_1 : i32, i32, i32
  }
  func.func @transform_1(%arg0: i32) -> (i32, i32) {
    %c0_i32 = arith.constant 0 : i32
    %c0_i32_0 = arith.constant 0 : i32
    return %arg0, %c0_i32 : i32, i32
  }
  func.func @transform_2(%arg0: i32) -> (i32, i32) {
    %c0_i32 = arith.constant 0 : i32
    %c0_i32_0 = arith.constant 0 : i32
    return %arg0, %c0_i32 : i32, i32
  }
}

</mosaic_0001>

<llo_original>
// kernel: tpu_custom_call.1
$region0: #{tpu_custom_call.1}
  #allocation0 [shape = 'u32[]', space=smem, size = 0x4, offset = 0x4, fixed_abs, tag = 'smem constant byte address 0x4 - core index']
  #allocation1 [shape = 'u32[144,128]{1,0:T(1,128)}', space=vmem, size = 0x12000, scoped, tag = 'internal scratch']
  %s0 = inlined_call_operand.vmem [shape: f32[1,3,128], index: 0, kind: input, shape index: {}]
  %s1 = inlined_call_operand.vmem [shape: f32[8,1], index: 1, kind: input, shape index: {}]
  %s2 = inlined_call_operand.hbm [shape: f32[8,128], index: 2, kind: output, shape index: {}]
  %s3 = sld [smem:[#allocation0]]
  $region18: #{tpu_custom_call.1} parent=0
    _
  %s5 = ssub.s32 1, %s3
  %s6 = scalar_select 0, %s5, %s3
  $region1: #{tpu_custom_call.1} parent=0
    #allocation2 [shape = 'u8[4096]{0}', space=vmem, size = 0x1000, scoped, tag = 'output window, operand 0, single buffered']
    #allocation3 [shape = 's32[1]{0}', space=sflag, size = 0x4, scoped, tag = 'scoped memory for tpu_custom_call.1']
    %7 = vsyncpa [#allocation3], 0
    // Predicated region
    $region2: #{tpu_custom_call.1} parent=1 // pred_check
      _
    $region3: #{tpu_custom_call.1} parent=1 // pred_check_branch
      %9 = sbr.rel (0) target = $region5
    $region4: #{tpu_custom_call.1} parent=1 // pred_region
      _
    $region5: #{tpu_custom_call.1} parent=1 // pred_fallthru
      _
    // Predicated region
    $region6: #{tpu_custom_call.1} parent=1 // pred_check
      _
    $region7: #{tpu_custom_call.1} parent=1 // pred_check_branch
      %11 = sbr.rel (0) target = $region9
    $region8: #{tpu_custom_call.1} parent=1 // pred_region
      _
    $region9: #{tpu_custom_call.1} parent=1 // pred_fallthru
      _
    %v12 = vld [vmem:[%s1] sm:$0xff]
    %14 = vset.pattern.permute.xlu0 0
    %15 = vperm.xlu0 %14, %v12
    %v16 = vpop.permute.xlu0 %15
    %v18 = vld [vmem:[%s0] sm:$0x1]
    %v19 = vlaneseq
    %v20 = vshrl.u32 %v19, 7
    %v21 = vsub.s32 0, %v20
    %v22 = vrot.slane %v18, %v21
    %v23 = vmax.f32 %v22, %v16
    %v24 = vld [vmem:[%s0 + $0x1] sm:$0x1]
    %v25 = vlaneseq
    %v26 = vshrl.u32 %v25, 7
    %v27 = vsub.s32 0, %v26
    %v28 = vrot.slane %v24, %v27
    %v29 = vmax.f32 %v28, %v16
    %v30 = vadd.f32 %v23, %v29
    %v31 = vld [vmem:[%s0 + $0x2] sm:$0x1]
    %v32 = vlaneseq
    %v33 = vshrl.u32 %v32, 7
    %v34 = vsub.s32 0, %v33
    %v35 = vrot.slane %v31, %v34
    %v36 = vmax.f32 %v35, %v16
    %v37 = vadd.f32 %v30, %v36
    %38 = vst [vmem:[#allocation2] sm:$0xff] %v37
    // Predicated region
    $region10: #{tpu_custom_call.1} parent=1 // pred_check
      _
    $region11: #{tpu_custom_call.1} parent=1 // pred_check_branch
      %40 = sbr.rel (0) target = $region13
    $region12: #{tpu_custom_call.1} parent=1 // pred_region
      %s42 = ssub.s32 128, 128
      %43 = vsyncadd [#allocation3], %s42
      %s45 = sshll.u32 [#allocation2], 4
      %s46 = int_to_ptr.vmem [resolvable:$true] %s45
      %48 = dma.vmem_to_hbm [thread:$0]  %s46, 128, %s2, [#allocation3]
    $region13: #{tpu_custom_call.1} parent=1 // pred_fallthru
      _
    // Predicated region
    $region14: #{tpu_custom_call.1} parent=1 // pred_check
      _
    $region15: #{tpu_custom_call.1} parent=1 // pred_check_branch
      %50 = sbr.rel (0) target = $region17
    $region16: #{tpu_custom_call.1} parent=1 // pred_region
      %51 = dma.done [#allocation3], 128
    $region17: #{tpu_custom_call.1} parent=1 // pred_fallthru
      _
    %52 = vsyncpa [#allocation3], 1

</llo_original>
